<compile_context>
chip_gen: v6e
topology: v6e:2x2x1
jax: 0.10.0
libtpu: 0.0.40
codegen_flags: <defaults>
</compile_context>

<pallas_src>
import functools

import jax
import jax.numpy as jnp
from jax.experimental import pallas as pl
from jax.experimental.pallas import tpu as pltpu


# ----------------------------------------------------------------------------
# Kernels
# ----------------------------------------------------------------------------
def input_projection_kernel(x_ref, w_ih_ref, b_ref, out_ref):
    # x_ref: (TM, I)   w_ih_ref: (I, H)   b_ref: (1, H)   out_ref: (TM, H)
    out_ref[...] = (
        jnp.dot(x_ref[...], w_ih_ref[...], preferred_element_type=jnp.float32)
        + b_ref[...])


def rnn_recurrence_kernel(xw_ref, w_hh_ref, w_fc_ref, b_fc_ref, out_ref, h_ref):
    # xw_ref:  (1, TB, H)  streamed time-slice of the precomputed projection
    # w_hh_ref:(H, H)      w_fc_ref:(H, O)      b_fc_ref:(1, O)
    # out_ref: (TB, O)     h_ref:   (TB, H) f32 scratch, persists across steps
    t = pl.program_id(1)

    @pl.when(t == 0)
    def _():
        h_ref[...] = jnp.zeros_like(h_ref)

    # Per-step work is only h @ W_hh + precomputed[t]; the input projection was
    # hoisted into one big matmul (phase 1).
    h_new = jnp.tanh(
        xw_ref[0]
        + jnp.dot(h_ref[...], w_hh_ref[...], preferred_element_type=jnp.float32))
    h_ref[...] = h_new

    @pl.when(t == pl.num_programs(1) - 1)
    def _():
        logits = (jnp.dot(h_new, w_fc_ref[...],
                          preferred_element_type=jnp.float32)
                  + b_fc_ref[...])
        m = jnp.max(logits, axis=1, keepdims=True)
        e = jnp.exp(logits - m)
        denom = jnp.sum(e, axis=1, keepdims=True)
        # EUP approximate reciprocal instead of a VALU divide.
        out_ref[...] = e * pl.reciprocal(denom, approx=True)


# ----------------------------------------------------------------------------
# Wrapper
# ----------------------------------------------------------------------------
def _vmem_limit_bytes(n_floats):
    # working set * 2 (double buffering) + headroom, clamped inside the
    # smallest physical VMEM (v7x: 64 MiB per TensorCore).
    need = 2 * 4 * n_floats + (4 << 20)
    return int(min(64 << 20, max(16 << 20, need)))


@functools.partial(jax.jit, static_argnames=("input_size",))
def rnn_model_forward(x, params, *, input_size):
    """x: (B, seq, input_size) float32, batch-first (PyTorch convention)."""
    w_ih, w_hh, b_ih, b_hh, w_fc, b_fc = params
    B = x.shape[0]
    x = x.reshape(B, -1, input_size)          # x.view(batch_size, -1, input_size)
    T = x.shape[1]
    H = w_hh.shape[0]
    O = w_fc.shape[0]
    I = input_size

    # Pre-transpose weights once (kernels compute plain h @ W); fold RNN biases.
    w_ih_t = w_ih.T                            # (I, H)
    w_hh_t = w_hh.T                            # (H, H)
    b_rnn = (b_ih + b_hh).reshape(1, H)        # (1, H)
    w_fc_t = w_fc.T                            # (H, O)
    b_fc_r = b_fc.reshape(1, O)                # (1, O)

    # Time-major layout for the recurrence.  We transpose the *smallest* tensor
    # (x, with I columns) exactly once so every downstream Pallas block keeps
    # full-extent last-two dims (tile-legal, no masked stores).
    x_rows = jnp.transpose(x, (1, 0, 2)).reshape(T * B, I)   # (T*B, I)

    # --- Phase 1: hoisted input projection, one tall matmul over T*B rows. ---
    rows = T * B
    tm = rows if rows < 512 else 512           # == rows, or a multiple of 8
    xw = pl.pallas_call(
        input_projection_kernel,
        out_shape=jax.ShapeDtypeStruct((rows, H), jnp.float32),
        grid_spec=pltpu.PrefetchScalarGridSpec(
            num_scalar_prefetch=0,
            grid=(pl.cdiv(rows, tm),),
            in_specs=[
                pl.BlockSpec((tm, I), lambda i: (i, 0)),   # streamed x rows
                pl.BlockSpec((I, H), lambda i: (0, 0)),    # W_ih resident
                pl.BlockSpec((1, H), lambda i: (0, 0)),    # folded bias resident
            ],
            out_specs=pl.BlockSpec((tm, H), lambda i: (i, 0))),
        compiler_params=pltpu.CompilerParams(
            dimension_semantics=("parallel",),
            vmem_limit_bytes=_vmem_limit_bytes(tm * I + I * H + H + tm * H)),
    )(x_rows, w_ih_t, b_rnn)
    xw = xw.reshape(T, B, H)                   # free reshape: time-major (T, B, H)

    # --- Phase 2: sequential recurrence over T, parallel over batch tiles. ---
    # Whole batch per tile unless it splits into sublane-aligned halves
    # (lets the two v7x TensorCores each take half the batch).
    tb = B // 2 if (B % 16 == 0) else B
    n_b = B // tb

    out = pl.pallas_call(
        rnn_recurrence_kernel,
        out_shape=jax.ShapeDtypeStruct((B, O), jnp.float32),
        grid_spec=pltpu.PrefetchScalarGridSpec(
            num_scalar_prefetch=0,
            grid=(n_b, T),
            in_specs=[
                pl.BlockSpec((1, tb, H), lambda b, t: (t, b, 0)),  # xw[t] streamed
                pl.BlockSpec((H, H), lambda b, t: (0, 0)),         # W_hh resident
                pl.BlockSpec((H, O), lambda b, t: (0, 0)),         # W_fc resident
                pl.BlockSpec((1, O), lambda b, t: (0, 0)),         # b_fc resident
            ],
            out_specs=pl.BlockSpec((tb, O), lambda b, t: (b, 0)),
            scratch_shapes=[pltpu.VMEM((tb, H), jnp.float32)]),    # hidden state
        compiler_params=pltpu.CompilerParams(
            dimension_semantics=("parallel", "arbitrary"),
            vmem_limit_bytes=_vmem_limit_bytes(
                2 * tb * H + H * H + H * O + O + tb * H + tb * O)),
    )(xw, w_hh_t, w_fc_t, b_fc_r)
    return out


# ----------------------------------------------------------------------------
# Parameter init + pure-JAX reference (for sanity checking)
# ----------------------------------------------------------------------------
def init_params(key, input_size, hidden_size, output_size):
    """PyTorch-shaped params: rnn.weight_ih_l0 (H, I), rnn.weight_hh_l0 (H, H),
       rnn.bias_ih_l0 (H,), rnn.bias_hh_l0 (H,), fc1.weight (O, H), fc1.bias (O,)."""
    k = jax.random.split(key, 6)
    bound = 1.0 / jnp.sqrt(hidden_size)
    w_ih = jax.random.uniform(k[0], (hidden_size, input_size),
                              minval=-bound, maxval=bound, dtype=jnp.float32)
    w_hh = jax.random.uniform(k[1], (hidden_size, hidden_size),
                              minval=-bound, maxval=bound, dtype=jnp.float32)
    b_ih = jax.random.uniform(k[2], (hidden_size,),
                              minval=-bound, maxval=bound, dtype=jnp.float32)
    b_hh = jax.random.uniform(k[3], (hidden_size,),
                              minval=-bound, maxval=bound, dtype=jnp.float32)
    w_fc = jax.random.uniform(k[4], (output_size, hidden_size),
                              minval=-bound, maxval=bound, dtype=jnp.float32)
    b_fc = jax.random.uniform(k[5], (output_size,),
                              minval=-bound, maxval=bound, dtype=jnp.float32)
    return (w_ih, w_hh, b_ih, b_hh, w_fc, b_fc)


def reference_forward(x, params, input_size):
    w_ih, w_hh, b_ih, b_hh, w_fc, b_fc = params
    B = x.shape[0]
    x = x.reshape(B, -1, input_size)
    H = w_hh.shape[0]
    h = jnp.zeros((B, H), jnp.float32)
    for t in range(x.shape[1]):
        h = jnp.tanh(x[:, t, :] @ w_ih.T + b_ih + h @ w_hh.T + b_hh)
    logits = h @ w_fc.T + b_fc
    return jax.nn.softmax(logits, axis=1)


if __name__ == "__main__":
    input_size = 4
    hidden_size = 32
    output_size = 8
    batch = 2
    seq = 8

    key = jax.random.PRNGKey(0)
    k_x, k_p = jax.random.split(key)
    x = jax.random.normal(k_x, (batch, seq, input_size), dtype=jnp.float32)
    params = init_params(k_p, input_size, hidden_size, output_size)

    out = rnn_model_forward(x, params, input_size=input_size)
    out = jax.block_until_ready(out)

    ref = reference_forward(x, params, input_size)
    assert out.shape == (batch, output_size)
    # Only deliberate deviation from exact f32: the EUP approximate reciprocal
    # in the softmax normalization (rel. err ~2^-12).
    assert jnp.allclose(out, ref, atol=1e-3, rtol=1e-3)

    print("KERNEL_OK")
</pallas_src>

<mosaic_0001>
module attributes {stable_mosaic.version = 11 : i64} {
  func.func @input_projection_kernel(%arg0: i32, %arg1: memref<16x4xf32, #tpu.memory_space<vmem>>, %arg2: memref<4x32xf32, #tpu.memory_space<vmem>>, %arg3: memref<1x32xf32, #tpu.memory_space<vmem>>, %arg4: memref<16x32xf32, #tpu.memory_space<vmem>>) attributes {dimension_semantics = [#tpu.dimension_semantics<parallel>], iteration_bounds = array<i64: 1>, scalar_prefetch = 0 : i64, scratch_operands = 0 : i64, tpu.core_type = #tpu.core_type<tc>, window_params = [{transform_indices = @transform_0, window_bounds = array<i64: 16, 4>}, {pipeline_mode = #tpu.pipeline_mode<synchronous>, transform_indices = @transform_1, window_bounds = array<i64: 4, 32>}, {pipeline_mode = #tpu.pipeline_mode<synchronous>, transform_indices = @transform_2, window_bounds = array<i64: 1, 32>}, {transform_indices = @transform_3, window_bounds = array<i64: 16, 32>}]} {
    %c0 = arith.constant 0 : index
    %c0_0 = arith.constant 0 : index
    %0 = vector.load %arg1[%c0, %c0_0] : memref<16x4xf32, #tpu.memory_space<vmem>>, vector<16x4xf32>
    %c0_1 = arith.constant 0 : index
    %c0_2 = arith.constant 0 : index
    %1 = vector.load %arg2[%c0_1, %c0_2] : memref<4x32xf32, #tpu.memory_space<vmem>>, vector<4x32xf32>
    %cst = arith.constant dense<0.000000e+00> : vector<16x32xf32>
    %2 = tpu.matmul %0, %1, %cst {dimension_numbers = #tpu.dot_dimension_numbers<[1], [0], [0], [1], [0, 0, 1, 1], [], []>} : vector<16x4xf32>, vector<4x32xf32>, vector<16x32xf32> -> vector<16x32xf32>
    %c0_3 = arith.constant 0 : index
    %c0_4 = arith.constant 0 : index
    %3 = vector.load %arg3[%c0_3, %c0_4] : memref<1x32xf32, #tpu.memory_space<vmem>>, vector<1x32xf32>
    %4 = vector.broadcast %3 : vector<1x32xf32> to vector<16x32xf32>
    %5 = arith.addf %2, %4 : vector<16x32xf32>
    %c0_5 = arith.constant 0 : index
    %c0_6 = arith.constant 0 : index
    %6 = vector.load %arg4[%c0_5, %c0_6] : memref<16x32xf32, #tpu.memory_space<vmem>>, vector<16x32xf32>
    tpu.vector_store %arg4[%c0_5, %c0_6], %5 {strides = array<i32>} : memref<16x32xf32, #tpu.memory_space<vmem>>, vector<16x32xf32>,
    return
  }
  func.func @transform_0(%arg0: i32) -> (i32, i32) {
    %c0_i32 = arith.constant 0 : i32
    %c0_i32_0 = arith.constant 0 : i32
    return %arg0, %c0_i32 : i32, i32
  }
  func.func @transform_1(%arg0: i32) -> (i32, i32) {
    %c0_i32 = arith.constant 0 : i32
    %c0_i32_0 = arith.constant 0 : i32
    %c0_i32_1 = arith.constant 0 : i32
    return %c0_i32, %c0_i32_0 : i32, i32
  }
  func.func @transform_2(%arg0: i32) -> (i32, i32) {
    %c0_i32 = arith.constant 0 : i32
    %c0_i32_0 = arith.constant 0 : i32
    %c0_i32_1 = arith.constant 0 : i32
    return %c0_i32, %c0_i32_0 : i32, i32
  }
  func.func @transform_3(%arg0: i32) -> (i32, i32) {
    %c0_i32 = arith.constant 0 : i32
    %c0_i32_0 = arith.constant 0 : i32
    return %arg0, %c0_i32 : i32, i32
  }
}

module attributes {stable_mosaic.version = 11 : i64} {
  func.func @rnn_recurrence_kernel(%arg0: i32, %arg1: i32, %arg2: memref<1x2x32xf32, #tpu.memory_space<vmem>>, %arg3: memref<32x32xf32, #tpu.memory_space<vmem>>, %arg4: memref<32x8xf32, #tpu.memory_space<vmem>>, %arg5: memref<1x8xf32, #tpu.memory_space<vmem>>, %arg6: memref<2x8xf32, #tpu.memory_space<vmem>>, %arg7: memref<2x32xf32, #tpu.memory_space<vmem>>) attributes {dimension_semantics = [#tpu.dimension_semantics<parallel>, #tpu.dimension_semantics<arbitrary>], iteration_bounds = array<i64: 1, 8>, scalar_prefetch = 0 : i64, scratch_operands = 1 : i64, tpu.core_type = #tpu.core_type<tc>, window_params = [{transform_indices = @transform_0, window_bounds = array<i64: 1, 2, 32>}, {pipeline_mode = #tpu.pipeline_mode<synchronous>, transform_indices = @transform_1, window_bounds = array<i64: 32, 32>}, {pipeline_mode = #tpu.pipeline_mode<synchronous>, transform_indices = @transform_2, window_bounds = array<i64: 32, 8>}, {pipeline_mode = #tpu.pipeline_mode<synchronous>, transform_indices = @transform_3, window_bounds = array<i64: 1, 8>}, {transform_indices = @transform_4, window_bounds = array<i64: 2, 8>}]} {
    %c0_i32 = arith.constant 0 : i32
    %0 = arith.cmpi eq, %arg1, %c0_i32 : i32
    %1 = arith.extui %0 : i1 to i32
    %c0_i32_0 = arith.constant 0 : i32
    %2 = arith.cmpi ne, %1, %c0_i32_0 : i32
    scf.if %2 {
      %cst_10 = arith.constant 0.000000e+00 : f32
      %14 = vector.broadcast %cst_10 : f32 to vector<2x32xf32>
      %c0_11 = arith.constant 0 : index
      %c0_12 = arith.constant 0 : index
      %15 = vector.load %arg7[%c0_11, %c0_12] : memref<2x32xf32, #tpu.memory_space<vmem>>, vector<2x32xf32>
      tpu.vector_store %arg7[%c0_11, %c0_12], %14 {strides = array<i32>} : memref<2x32xf32, #tpu.memory_space<vmem>>, vector<2x32xf32>,
    } else {
    }
    %c0 = arith.constant 0 : index
    %c0_1 = arith.constant 0 : index
    %c0_2 = arith.constant 0 : index
    %3 = vector.load %arg2[%c0, %c0_1, %c0_2] : memref<1x2x32xf32, #tpu.memory_space<vmem>>, vector<1x2x32xf32>
    %4 = vector.shape_cast %3 : vector<1x2x32xf32> to vector<2x32xf32>
    %c0_3 = arith.constant 0 : index
    %c0_4 = arith.constant 0 : index
    %5 = vector.load %arg7[%c0_3, %c0_4] : memref<2x32xf32, #tpu.memory_space<vmem>>, vector<2x32xf32>
    %c0_5 = arith.constant 0 : index
    %c0_6 = arith.constant 0 : index
    %6 = vector.load %arg3[%c0_5, %c0_6] : memref<32x32xf32, #tpu.memory_space<vmem>>, vector<32x32xf32>
    %cst = arith.constant dense<0.000000e+00> : vector<2x32xf32>
    %7 = tpu.matmul %5, %6, %cst {dimension_numbers = #tpu.dot_dimension_numbers<[1], [0], [0], [1], [0, 0, 1, 1], [], []>} : vector<2x32xf32>, vector<32x32xf32>, vector<2x32xf32> -> vector<2x32xf32>
    %8 = arith.addf %4, %7 : vector<2x32xf32>
    %9 = math.tanh %8 : vector<2x32xf32>
    %c0_7 = arith.constant 0 : index
    %c0_8 = arith.constant 0 : index
    %10 = vector.load %arg7[%c0_7, %c0_8] : memref<2x32xf32, #tpu.memory_space<vmem>>, vector<2x32xf32>
    tpu.vector_store %arg7[%c0_7, %c0_8], %9 {strides = array<i32>} : memref<2x32xf32, #tpu.memory_space<vmem>>, vector<2x32xf32>,
    %c7_i32 = arith.constant 7 : i32
    %11 = arith.cmpi eq, %arg1, %c7_i32 : i32
    %12 = arith.extui %11 : i1 to i32
    %c0_i32_9 = arith.constant 0 : i32
    %13 = arith.cmpi ne, %12, %c0_i32_9 : i32
    scf.if %13 {
      %c0_10 = arith.constant 0 : index
      %c0_11 = arith.constant 0 : index
      %14 = vector.load %arg4[%c0_10, %c0_11] : memref<32x8xf32, #tpu.memory_space<vmem>>, vector<32x8xf32>
      %cst_12 = arith.constant dense<0.000000e+00> : vector<2x8xf32>
      %15 = tpu.matmul %9, %14, %cst_12 {dimension_numbers = #tpu.dot_dimension_numbers<[1], [0], [0], [1], [0, 0, 1, 1], [], []>} : vector<2x32xf32>, vector<32x8xf32>, vector<2x8xf32> -> vector<2x8xf32>
      %c0_13 = arith.constant 0 : index
      %c0_14 = arith.constant 0 : index
      %16 = vector.load %arg5[%c0_13, %c0_14] : memref<1x8xf32, #tpu.memory_space<vmem>>, vector<1x8xf32>
      %17 = vector.broadcast %16 : vector<1x8xf32> to vector<2x8xf32>
      %18 = arith.addf %15, %17 : vector<2x8xf32>
      %cst_15 = arith.constant dense<0xFF800000> : vector<2xf32>
      %19 = vector.multi_reduction <maximumf>, %18, %cst_15 [1] : vector<2x8xf32> to vector<2xf32>
      %20 = vector.shape_cast %19 : vector<2xf32> to vector<2x1xf32>
      %21 = vector.broadcast %20 : vector<2x1xf32> to vector<2x8xf32>
      %22 = arith.subf %18, %21 : vector<2x8xf32>
      %23 = math.exp %22 : vector<2x8xf32>
      %cst_16 = arith.constant dense<0.000000e+00> : vector<2xf32>
      %24 = vector.multi_reduction <add>, %23, %cst_16 [1] : vector<2x8xf32> to vector<2xf32>
      %25 = vector.shape_cast %24 : vector<2xf32> to vector<2x1xf32>
      %26 = tpu.reciprocal %25 {approx = true} : vector<2x1xf32> -> vector<2x1xf32>
      %27 = vector.broadcast %26 : vector<2x1xf32> to vector<2x8xf32>
      %28 = arith.mulf %23, %27 : vector<2x8xf32>
      %c0_17 = arith.constant 0 : index
      %c0_18 = arith.constant 0 : index
      %29 = vector.load %arg6[%c0_17, %c0_18] : memref<2x8xf32, #tpu.memory_space<vmem>>, vector<2x8xf32>
      tpu.vector_store %arg6[%c0_17, %c0_18], %28 {strides = array<i32>} : memref<2x8xf32, #tpu.memory_space<vmem>>, vector<2x8xf32>,
    } else {
    }
    return
  }
  func.func @transform_0(%arg0: i32, %arg1: i32) -> (i32, i32, i32) {
    %c0_i32 = arith.constant 0 : i32
    %c0_i32_0 = arith.constant 0 : i32
    return %arg1, %arg0, %c0_i32 : i32, i32, i32
  }
  func.func @transform_1(%arg0: i32, %arg1: i32) -> (i32, i32) {
    %c0_i32 = arith.constant 0 : i32
    %c0_i32_0 = arith.constant 0 : i32
    %c0_i32_1 = arith.constant 0 : i32
    return %c0_i32, %c0_i32_0 : i32, i32
  }
  func.func @transform_2(%arg0: i32, %arg1: i32) -> (i32, i32) {
    %c0_i32 = arith.constant 0 : i32
    %c0_i32_0 = arith.constant 0 : i32
    %c0_i32_1 = arith.constant 0 : i32
    return %c0_i32, %c0_i32_0 : i32, i32
  }
  func.func @transform_3(%arg0: i32, %arg1: i32) -> (i32, i32) {
    %c0_i32 = arith.constant 0 : i32
    %c0_i32_0 = arith.constant 0 : i32
    %c0_i32_1 = arith.constant 0 : i32
    return %c0_i32, %c0_i32_0 : i32, i32
  }
  func.func @transform_4(%arg0: i32, %arg1: i32) -> (i32, i32) {
    %c0_i32 = arith.constant 0 : i32
    %c0_i32_0 = arith.constant 0 : i32
    return %arg0, %c0_i32 : i32, i32
  }
}

</mosaic_0001>

<llo_original>
// kernel: rnn_model_forward.2
$region0: #{rnn_model_forward.2}
  #allocation0 [shape = 'u32[]', space=smem, size = 0x4, offset = 0x4, fixed_abs, tag = 'smem constant byte address 0x4 - core index']
  #allocation1 [shape = 'u32[144,128]{1,0:T(1,128)}', space=vmem, size = 0x12000, scoped, tag = 'internal scratch']
  %s0 = inlined_call_operand.vmem [shape: f32[16,4], index: 0, kind: input, shape index: {}]
  %s1 = inlined_call_operand.vmem [shape: f32[4,32], index: 1, kind: input, shape index: {}]
  %s2 = inlined_call_operand.vmem [shape: f32[1,32], index: 2, kind: input, shape index: {}]
  %s3 = inlined_call_operand.vmem [shape: f32[16,32], index: 3, kind: output, shape index: {}]
  %s4 = sld [smem:[#allocation0]]
  $region22: #{rnn_model_forward.2} parent=0
    _
  %s6 = ssub.s32 1, %s4
  %s7 = scalar_select 0, %s6, %s4
  // Predicated region
  $region2: #{rnn_model_forward.2} parent=0 // pred_check
    _
  $region3: #{rnn_model_forward.2} parent=0 // pred_check_branch
    %9 = sbr.rel (0) target = $region5
  $region4: #{rnn_model_forward.2} parent=0 // pred_region
    _
  $region5: #{rnn_model_forward.2} parent=0 // pred_fallthru
    _
  // Predicated region
  $region6: #{rnn_model_forward.2} parent=0 // pred_check
    _
  $region7: #{rnn_model_forward.2} parent=0 // pred_check_branch
    %11 = sbr.rel (0) target = $region9
  $region8: #{rnn_model_forward.2} parent=0 // pred_region
    _
  $region9: #{rnn_model_forward.2} parent=0 // pred_fallthru
    _
  // Predicated region
  $region10: #{rnn_model_forward.2} parent=0 // pred_check
    _
  $region11: #{rnn_model_forward.2} parent=0 // pred_check_branch
    %13 = sbr.rel (0) target = $region13
  $region12: #{rnn_model_forward.2} parent=0 // pred_region
    _
  $region13: #{rnn_model_forward.2} parent=0 // pred_fallthru
    _
  %v14 = vld [vmem:[%s0] sm:$0xff]
  %v15 = vld [vmem:[%s0 + $0x8] sm:$0xff]
  %v16 = vld [vmem:[%s1] sm:$0xf]
  %v17 = vld [vmem:[%s2] sm:$0x1]
  %v19 = vlaneseq
  %v20 = vshrl.u32 %v19, 7
  %v21 = vsub.s32 0, %v20
  %v22 = vrot.slane %v17, %v21
  %vm24 = vcmask 31744
  %v26 = vsel %vm24, %v14, 0
  %v29 = vsel %vm24, %v15, 0
  %vm31 = vcmask 1043456
  %v33 = vsel %vm31, %v16, 0
  %35 = vmatprep.subr.mxu0 0.0
  %36 = vmatpush1.msra.mxu0 0.0
  %37 = vmatprep.subr.mxu0 0.0
  %38 = vmatpush1.msra.mxu0 0.0
  %39 = vmatprep.subr.mxu0 0.0
  %40 = vmatpush1.msra.mxu0 0.0
  %41 = vmatprep.subr.mxu0 0.0
  %42 = vmatpush1.msra.mxu0 0.0
  %43 = vmatprep.subr.mxu0 0.0
  %44 = vmatpush1.msra.mxu0 0.0
  %45 = vmatprep.subr.mxu0 0.0
  %46 = vmatpush1.msra.mxu0 0.0
  %47 = vmatprep.subr.mxu0 0.0
  %48 = vmatpush1.msra.mxu0 0.0
  %49 = vmatprep.subr.mxu0 0.0
  %50 = vmatpush1.msra.mxu0 0.0
  %51 = vmatprep.subr.mxu0 0.0
  %52 = vmatpush1.msra.mxu0 0.0
  %53 = vmatprep.subr.mxu0 0.0
  %54 = vmatpush1.msra.mxu0 0.0
  %55 = vmatprep.subr.mxu0 0.0
  %56 = vmatpush1.msra.mxu0 0.0
  %57 = vmatprep.subr.mxu0 0.0
  %58 = vmatpush1.msra.mxu0 0.0
  %59 = vmatprep.subr.mxu0 0.0
  %60 = vmatpush1.msra.mxu0 0.0
  %61 = vmatprep.subr.mxu0 0.0
  %62 = vmatpush1.msra.mxu0 0.0
  %63 = vmatprep.subr.mxu0 0.0
  %64 = vmatpush1.msra.mxu0 0.0
  %65 = vmatprep.subr.mxu0 0.0
  %66 = vmatpush1.msra.mxu0 %v33
  %67 = vmatprep.subr.mxu0 0.0
  %68 = vmatpush2.msra.mxu0 0.0
  %69 = vmatprep.subr.mxu0 0.0
  %70 = vmatpush2.msra.mxu0 0.0
  %71 = vmatprep.subr.mxu0 0.0
  %72 = vmatpush2.msra.mxu0 0.0
  %73 = vmatprep.subr.mxu0 0.0
  %74 = vmatpush2.msra.mxu0 0.0
  %75 = vmatprep.subr.mxu0 0.0
  %76 = vmatpush2.msra.mxu0 0.0
  %77 = vmatprep.subr.mxu0 0.0
  %78 = vmatpush2.msra.mxu0 0.0
  %79 = vmatprep.subr.mxu0 0.0
  %80 = vmatpush2.msra.mxu0 0.0
  %81 = vmatprep.subr.mxu0 0.0
  %82 = vmatpush2.msra.mxu0 0.0
  %83 = vmatprep.subr.mxu0 0.0
  %84 = vmatpush2.msra.mxu0 0.0
  %85 = vmatprep.subr.mxu0 0.0
  %86 = vmatpush2.msra.mxu0 0.0
  %87 = vmatprep.subr.mxu0 0.0
  %88 = vmatpush2.msra.mxu0 0.0
  %89 = vmatprep.subr.mxu0 0.0
  %90 = vmatpush2.msra.mxu0 0.0
  %91 = vmatprep.subr.mxu0 0.0
  %92 = vmatpush2.msra.mxu0 0.0
  %93 = vmatprep.subr.mxu0 0.0
  %94 = vmatpush2.msra.mxu0 0.0
  %95 = vmatprep.subr.mxu0 0.0
  %96 = vmatpush2.msra.mxu0 0.0
  %97 = vmatprep.subr.mxu0 0.0
  %98 = vmatpush2.msra.mxu0 0.0
  %99 = vmatprep.mubr.f32.mxu0 0.0
  %100 = vmatmul.mubr.f32.gmra.mxu0 %v26
  %v101 = vpop.f32.mrf.mxu0
  %v102 = vadd.f32 %v22, %v101
  %v103 = vpop.f32.mrf.mxu0
  %104 = vmatprep.mubr.f32.mxu0 0.0
  %105 = vmatmul.mubr.f32.gmra.mxu0 %v29
  %v106 = vpop.f32.mrf.mxu0
  %v107 = vadd.f32 %v22, %v106
  %v108 = vpop.f32.mrf.mxu0
  %109 = vdwg.mxu0
  %vm110 = vcmask 261120
  %111 = vst.msk [vmem:[%s3] sm:$0xff] %vm110, %v102
  %112 = vst.msk [vmem:[%s3 + $0x8] sm:$0xff] %vm110, %v107
  // Predicated region
  $region14: #{rnn_model_forward.2} parent=0 // pred_check
    _
  $region15: #{rnn_model_forward.2} parent=0 // pred_check_branch
    %114 = sbr.rel (0) target = $region17
  $region16: #{rnn_model_forward.2} parent=0 // pred_region
    _
  $region17: #{rnn_model_forward.2} parent=0 // pred_fallthru
    _
  // Predicated region
  $region18: #{rnn_model_forward.2} parent=0 // pred_check
    _
  $region19: #{rnn_model_forward.2} parent=0 // pred_check_branch
    %116 = sbr.rel (0) target = $region21
  $region20: #{rnn_model_forward.2} parent=0 // pred_region
    _
  $region21: #{rnn_model_forward.2} parent=0 // pred_fallthru
    _

// kernel: rnn_model_forward.3
$region0: #{rnn_model_forward.3}
  #allocation0 [shape = 'u32[]', space=smem, size = 0x4, offset = 0x4, fixed_abs, tag = 'smem constant byte address 0x4 - core index']
  #allocation1 [shape = 'u32[144,128]{1,0:T(1,128)}', space=vmem, size = 0x12000, scoped, tag = 'internal scratch']
  #allocation2 [shape = 'f32[2,32]{1,0:T(2,128)}', space=vmem, size = 0x400, scoped, tag = 'scratch operand']
  %s0 = inlined_call_operand.vmem [shape: f32[8,2,32], index: 0, kind: input, shape index: {}]
  %s1 = inlined_call_operand.vmem [shape: f32[32,32], index: 1, kind: input, shape index: {}]
  %s2 = inlined_call_operand.vmem [shape: f32[32,8], index: 2, kind: input, shape index: {}]
  %s3 = inlined_call_operand.vmem [shape: f32[1,8], index: 3, kind: input, shape index: {}]
  %s4 = inlined_call_operand.hbm [shape: f32[2,8], index: 4, kind: output, shape index: {}]
  %s5 = sld [smem:[#allocation0]]
  $region57: #{rnn_model_forward.3} parent=0
    _
  %s7 = ssub.s32 1, %s5
  %s8 = scalar_select 0, %s7, %s5
  $region1: #{rnn_model_forward.3} parent=0
    #allocation3 [shape = 'u8[1024]{0}', space=vmem, size = 0x400, scoped, tag = 'output window, operand 0, single buffered']
    #allocation4 [shape = 's32[2]{0}', space=sflag, size = 0x8, scoped, tag = 'scoped memory for rnn_model_forward.3']
    %9 = vsyncpa [#allocation4], 0
    loop: start=0, step=1, limit=10
    $region2: #{rnn_model_forward.3} parent=1 // loop_pre_header
      _
    $region3: #{rnn_model_forward.3} parent=1 // loop_header
      %s11 = sphi 0, %s15
      %p12 = scmp.ge.s32.totalorder %s11, 10
      %s18 = sphi 0, %s30
      %s19 = sphi 0, %s26
      %s20 = sphi 0, %s18
      %s21 = sphi 0, %s19
      %s22 = sphi 0, %s20
      %s23 = sphi 0, %s21
      %s35 = sphi 0, %s37
      %s38 = sphi 0, %s35
      %s39 = sphi 0, %s38
      %s55 = sphi 0, %s39
      %s59 = sphi 0, %s59
      %s61 = sphi 0, %s59
      %s62 = sphi 0, %s61
      %s76 = sphi 0, %s62
      %s80 = sphi 0, %s80
      %s82 = sphi 0, %s80
      %s83 = sphi 0, %s82
      %s97 = sphi 0, %s83
      %s101 = sphi 0, %s101
      %s103 = sphi 0, %s101
      %s104 = sphi 0, %s103
      %s118 = sphi 0, %s104
      %s124 = sphi 0, %s126
      %s127 = sphi 0, %s124
      %s128 = sphi 0, %s127
      %s144 = sphi 0, %s128
    $region4: #{rnn_model_forward.3} parent=1 // loop_header_branch
      %14 = sbr.rel (%p12) target = $region8
    $region5: #{rnn_model_forward.3} parent=1 // loop_body
      %s16 = ssub.s32 %s11, 1
      %s17 = ssub.s32 %s11, 2
      %s24 = sadd.s32 1, %s19
      %p25 = scmp.ge.s32.totalorder %s24, 8
      %s26 = scalar_select %p25, 0, %s24
      %s27 = sadd.s32 1, %s18
      %s28 = scalar_select %p25, %s27, %s18
      %p29 = scmp.ge.s32.totalorder %s28, 1
      %s30 = scalar_select %p29, 0, %s28
      %s31 = ssub.s32 %s19, %s26
      %s32 = ssub.s32 %s18, %s30
      %s33 = sor.u32 %s31, %s32
      %p34 = scmp.eq.s32.totalorder %s33, 0
      %s36 = sadd.s32 %s35, 1
      %s37 = scalar_select %p34, %s35, %s36
      %p40 = pneg %p34
      %p41 = scmp.eq.s32.totalorder %s11, 7
      %p42 = por %p40, %p41
      %p43 = scmp.ne.s32.totalorder %s35, %s38
      %p44 = scmp.eq.s32.totalorder %s11, 0
      %p45 = por %p43, %p44
      %p46 = scmp.ne.s32.totalorder %s35, %s38
      %p47 = scmp.eq.s32.totalorder %s16, 7
      %p48 = por %p46, %p47
      %p49 = scmp.ne.s32.totalorder %s38, %s39
      %p50 = scmp.eq.s32.totalorder %s16, 0
      %p51 = por %p49, %p50
      %p52 = scmp.ne.s32.totalorder %s38, %s39
      %p53 = scmp.eq.s32.totalorder %s17, 7
      %p54 = por %p52, %p53
      %p56 = scmp.ne.s32.totalorder %s39, %s55
      %p57 = scmp.eq.s32.totalorder %s17, 0
      %p58 = por %p56, %p57
      %s60 = sadd.s32 %s59, 1
      %p63 = scmp.eq.s32.totalorder %s11, 7
      %p64 = scmp.ne.s32.totalorder %s59, %s61
      %p65 = scmp.eq.s32.totalorder %s11, 0
      %p66 = por %p64, %p65
      %p67 = scmp.ne.s32.totalorder %s59, %s61
      %p68 = scmp.eq.s32.totalorder %s16, 7
      %p69 = por %p67, %p68
      %p70 = scmp.ne.s32.totalorder %s61, %s62
      %p71 = scmp.eq.s32.totalorder %s16, 0
      %p72 = por %p70, %p71
      %p73 = scmp.ne.s32.totalorder %s61, %s62
      %p74 = scmp.eq.s32.totalorder %s17, 7
      %p75 = por %p73, %p74
      %p77 = scmp.ne.s32.totalorder %s62, %s76
      %p78 = scmp.eq.s32.totalorder %s17, 0
      %p79 = por %p77, %p78
      %s81 = sadd.s32 %s80, 1
      %p84 = scmp.eq.s32.totalorder %s11, 7
      %p85 = scmp.ne.s32.totalorder %s80, %s82
      %p86 = scmp.eq.s32.totalorder %s11, 0
      %p87 = por %p85, %p86
      %p88 = scmp.ne.s32.totalorder %s80, %s82
      %p89 = scmp.eq.s32.totalorder %s16, 7
      %p90 = por %p88, %p89
      %p91 = scmp.ne.s32.totalorder %s82, %s83
      %p92 = scmp.eq.s32.totalorder %s16, 0
      %p93 = por %p91, %p92
      %p94 = scmp.ne.s32.totalorder %s82, %s83
      %p95 = scmp.eq.s32.totalorder %s17, 7
      %p96 = por %p94, %p95
      %p98 = scmp.ne.s32.totalorder %s83, %s97
      %p99 = scmp.eq.s32.totalorder %s17, 0
      %p100 = por %p98, %p99
      %s102 = sadd.s32 %s101, 1
      %p105 = scmp.eq.s32.totalorder %s11, 7
      %p106 = scmp.ne.s32.totalorder %s101, %s103
      %p107 = scmp.eq.s32.totalorder %s11, 0
      %p108 = por %p106, %p107
      %p109 = scmp.ne.s32.totalorder %s101, %s103
      %p110 = scmp.eq.s32.totalorder %s16, 7
      %p111 = por %p109, %p110
      %p112 = scmp.ne.s32.totalorder %s103, %s104
      %p113 = scmp.eq.s32.totalorder %s16, 0
      %p114 = por %p112, %p113
      %p115 = scmp.ne.s32.totalorder %s103, %s104
      %p116 = scmp.eq.s32.totalorder %s17, 7
      %p117 = por %p115, %p116
      %p119 = scmp.ne.s32.totalorder %s104, %s118
      %p120 = scmp.eq.s32.totalorder %s17, 0
      %p121 = por %p119, %p120
      %s122 = ssub.s32 %s18, %s30
      %p123 = scmp.eq.s32.totalorder %s122, 0
      %s125 = sadd.s32 %s124, 1
      %s126 = scalar_select %p123, %s124, %s125
      %p129 = pneg %p123
      %p130 = scmp.eq.s32.totalorder %s11, 7
      %p131 = por %p129, %p130
      %p132 = scmp.ne.s32.totalorder %s124, %s127
      %p133 = scmp.eq.s32.totalorder %s11, 0
      %p134 = por %p132, %p133
      %p135 = scmp.ne.s32.totalorder %s124, %s127
      %p136 = scmp.eq.s32.totalorder %s16, 7
      %p137 = por %p135, %p136
      %p138 = scmp.ne.s32.totalorder %s127, %s128
      %p139 = scmp.eq.s32.totalorder %s16, 0
      %p140 = por %p138, %p139
      %p141 = scmp.ne.s32.totalorder %s127, %s128
      %p142 = scmp.eq.s32.totalorder %s17, 7
      %p143 = por %p141, %p142
      %p145 = scmp.ne.s32.totalorder %s128, %s144
      %p146 = scmp.eq.s32.totalorder %s17, 0
      %p147 = por %p145, %p146
      %p148 = scmp.le.s32.totalorder 1, %s11
      %p149 = scmp.lt.s32.totalorder %s11, 9
      %p150 = pnand %p148, %p149
      %p151 = pneg %p150
      // Predicated region
      $region9: #{rnn_model_forward.3} parent=5 // pred_check
        _
      $region10: #{rnn_model_forward.3} parent=5 // pred_check_branch
        %153 = sbr.rel (%p150) target = $region12
      $region11: #{rnn_model_forward.3} parent=5 // pred_region
        %s154 = ssub.s32 %s11, 1
        // Predicated region
        $region13: #{rnn_model_forward.3} parent=11 // pred_check
          %p155 = pneg %p72
        $region14: #{rnn_model_forward.3} parent=11 // pred_check_branch
          %157 = sbr.rel (%p155) target = $region16
        $region15: #{rnn_model_forward.3} parent=11 // pred_region
          _
        $region16: #{rnn_model_forward.3} parent=11 // pred_fallthru
          _
        // Predicated region
        $region17: #{rnn_model_forward.3} parent=11 // pred_check
          %p158 = pneg %p93
        $region18: #{rnn_model_forward.3} parent=11 // pred_check_branch
          %160 = sbr.rel (%p158) target = $region20
        $region19: #{rnn_model_forward.3} parent=11 // pred_region
          _
        $region20: #{rnn_model_forward.3} parent=11 // pred_fallthru
          _
        // Predicated region
        $region21: #{rnn_model_forward.3} parent=11 // pred_check
          %p161 = pneg %p114
        $region22: #{rnn_model_forward.3} parent=11 // pred_check_branch
          %163 = sbr.rel (%p161) target = $region24
        $region23: #{rnn_model_forward.3} parent=11 // pred_region
          _
        $region24: #{rnn_model_forward.3} parent=11 // pred_fallthru
          _
      $region12: #{rnn_model_forward.3} parent=5 // pred_fallthru
        _
      %p164 = scmp.lt.s32.totalorder %s11, 8
      // Predicated region
      $region25: #{rnn_model_forward.3} parent=5 // pred_check
        %p165 = pneg %p164
      $region26: #{rnn_model_forward.3} parent=5 // pred_check_branch
        %167 = sbr.rel (%p165) target = $region28
      $region27: #{rnn_model_forward.3} parent=5 // pred_region
        // Predicated region
        $region29: #{rnn_model_forward.3} parent=27 // pred_check
          %p168 = pneg %p45
        $region30: #{rnn_model_forward.3} parent=27 // pred_check_branch
          %170 = sbr.rel (%p168) target = $region32
        $region31: #{rnn_model_forward.3} parent=27 // pred_region
          %p171 = scmp.lt.s32.totalorder %s19, 7
          %s172 = scalar_select %p171, %s19, 7
          %p173 = scmp.lt.s32.totalorder %s18, 0
          %s174 = scalar_select %p173, %s18, 0
          %s175 = sadd.s32 %s174, %s172
          %s176 = smul.addr %s175, 2
          %s177 = scalar_lea.vmem %s0, %s176
        $region32: #{rnn_model_forward.3} parent=27 // pred_fallthru
          _
      $region28: #{rnn_model_forward.3} parent=5 // pred_fallthru
        _
      %p178 = scmp.le.s32.totalorder 1, %s11
      %p179 = scmp.lt.s32.totalorder %s11, 9
      %p180 = pnand %p178, %p179
      %p181 = pneg %p180
      // Predicated region
      $region33: #{rnn_model_forward.3} parent=5 // pred_check
        _
      $region34: #{rnn_model_forward.3} parent=5 // pred_check_branch
        %183 = sbr.rel (%p180) target = $region36
      $region35: #{rnn_model_forward.3} parent=5 // pred_region
        %s184 = ssub.s32 %s11, 1
        %p185 = scmp.lt.s32.totalorder %s21, 7
        %s186 = scalar_select %p185, %s21, 7
        %p187 = scmp.lt.s32.totalorder %s20, 0
        %s188 = scalar_select %p187, %s20, 0
        %s189 = sadd.s32 %s188, %s186
        %s190 = smul.addr %s189, 2
        %s191 = scalar_lea.vmem %s0, %s190
        %p192 = pneg %p51
        %p193 = pneg %p48
        %p194 = pneg %p72
        %p195 = pneg %p69
        %p196 = pneg %p93
        %p197 = pneg %p90
        %p198 = pneg %p114
        %p199 = pneg %p111
        %p200 = pneg %p140
        %p201 = pneg %p137
        %p202 = scmp.lt.s32.totalorder %s21, 7
        %s203 = scalar_select %p202, %s21, 7
        %p204 = scmp.lt.s32.totalorder %s20, 0
        %s205 = scalar_select %p204, %s20, 0
        %s206 = sadd.s32 %s205, %s203
        %s207 = smul.addr %s206, 2
        %s208 = scalar_lea.vmem %s0, %s207
        %p209 = scmp.eq.s32.totalorder %s21, 0
        // Predicated region
        $region37: #{rnn_model_forward.3} parent=35 // pred_check
          %p210 = pneg %p209
        $region38: #{rnn_model_forward.3} parent=35 // pred_check_branch
          %212 = sbr.rel (%p210) target = $region40
        $region39: #{rnn_model_forward.3} parent=35 // pred_region
          %vm213 = vcmask 254976
          %214 = vst.msk [vmem:[#allocation2] sm:$0x3] %vm213, 0.0
        $region40: #{rnn_model_forward.3} parent=35 // pred_fallthru
          _
        %v215 = vld [vmem:[%s208] sm:$0x3]
        %v216 = vld [vmem:[#allocation2] sm:$0x3]
        %v217 = vld [vmem:[%s1] sm:$0xff]
        %v218 = vld [vmem:[%s1 + $0x8] sm:$0xff]
        %v219 = vld [vmem:[%s1 + $0x10] sm:$0xff]
        %v220 = vld [vmem:[%s1 + $0x18] sm:$0xff]
        %vm221 = vcmask 261120
        %v223 = vsel %vm221, %v216, 0
        %225 = vmatprep.subr.mxu0 0.0
        %226 = vmatpush1.msra.mxu0 0.0
        %227 = vmatprep.subr.mxu0 0.0
        %228 = vmatpush1.msra.mxu0 0.0
        %229 = vmatprep.subr.mxu0 0.0
        %230 = vmatpush1.msra.mxu0 0.0
        %231 = vmatprep.subr.mxu0 0.0
        %232 = vmatpush1.msra.mxu0 0.0
        %233 = vmatprep.subr.mxu0 0.0
        %234 = vmatpush1.msra.mxu0 0.0
        %235 = vmatprep.subr.mxu0 0.0
        %236 = vmatpush1.msra.mxu0 0.0
        %237 = vmatprep.subr.mxu0 0.0
        %238 = vmatpush1.msra.mxu0 0.0
        %239 = vmatprep.subr.mxu0 0.0
        %240 = vmatpush1.msra.mxu0 0.0
        %241 = vmatprep.subr.mxu0 0.0
        %242 = vmatpush1.msra.mxu0 0.0
        %243 = vmatprep.subr.mxu0 0.0
        %244 = vmatpush1.msra.mxu0 0.0
        %245 = vmatprep.subr.mxu0 0.0
        %246 = vmatpush1.msra.mxu0 0.0
        %247 = vmatprep.subr.mxu0 0.0
        %248 = vmatpush1.msra.mxu0 0.0
        %249 = vmatprep.subr.mxu0 0.0
        %250 = vmatpush1.msra.mxu0 %v220
        %251 = vmatprep.subr.mxu0 0.0
        %252 = vmatpush1.msra.mxu0 %v219
        %253 = vmatprep.subr.mxu0 0.0
        %254 = vmatpush1.msra.mxu0 %v218
        %255 = vmatprep.subr.mxu0 0.0
        %256 = vmatpush1.msra.mxu0 %v217
        %257 = vmatprep.subr.mxu0 0.0
        %258 = vmatpush2.msra.mxu0 0.0
        %259 = vmatprep.subr.mxu0 0.0
        %260 = vmatpush2.msra.mxu0 0.0
        %261 = vmatprep.subr.mxu0 0.0
        %262 = vmatpush2.msra.mxu0 0.0
        %263 = vmatprep.subr.mxu0 0.0
        %264 = vmatpush2.msra.mxu0 0.0
        %265 = vmatprep.subr.mxu0 0.0
        %266 = vmatpush2.msra.mxu0 0.0
        %267 = vmatprep.subr.mxu0 0.0
        %268 = vmatpush2.msra.mxu0 0.0
        %269 = vmatprep.subr.mxu0 0.0
        %270 = vmatpush2.msra.mxu0 0.0
        %271 = vmatprep.subr.mxu0 0.0
        %272 = vmatpush2.msra.mxu0 0.0
        %273 = vmatprep.subr.mxu0 0.0
        %274 = vmatpush2.msra.mxu0 0.0
        %275 = vmatprep.subr.mxu0 0.0
        %276 = vmatpush2.msra.mxu0 0.0
        %277 = vmatprep.subr.mxu0 0.0
        %278 = vmatpush2.msra.mxu0 0.0
        %279 = vmatprep.subr.mxu0 0.0
        %280 = vmatpush2.msra.mxu0 0.0
        %281 = vmatprep.subr.mxu0 0.0
        %282 = vmatpush2.msra.mxu0 0.0
        %283 = vmatprep.subr.mxu0 0.0
        %284 = vmatpush2.msra.mxu0 0.0
        %285 = vmatprep.subr.mxu0 0.0
        %286 = vmatpush2.msra.mxu0 0.0
        %287 = vmatprep.subr.mxu0 0.0
        %288 = vmatpush2.msra.mxu0 0.0
        %289 = vmatprep.mubr.f32.mxu0 0.0
        %290 = vmatmul.mubr.f32.gmra.mxu0 %v223
        %v291 = vpop.f32.mrf.mxu0
        %v292 = vadd.f32 0.0, %v291
        %v293 = vpop.f32.mrf.mxu0
        %294 = vdwg.mxu0
        %v295 = vadd.f32 %v215, %v292
        %v296 = vtanh.pop %v295
        %vm297 = vcmask 254976
        %298 = vst.msk [vmem:[#allocation2] sm:$0x3] %vm297, %v296
        %p299 = scmp.eq.s32.totalorder %s21, 7
        // Predicated region
        $region41: #{rnn_model_forward.3} parent=35 // pred_check
          %p300 = pneg %p299
        $region42: #{rnn_model_forward.3} parent=35 // pred_check_branch
          %302 = sbr.rel (%p300) target = $region44
        $region43: #{rnn_model_forward.3} parent=35 // pred_region
          %v303 = vld [vmem:[%s2] sm:$0xff]
          %v304 = vld [vmem:[%s2 + $0x8] sm:$0xff]
          %v305 = vld [vmem:[%s2 + $0x10] sm:$0xff]
          %v306 = vld [vmem:[%s2 + $0x18] sm:$0xff]
          %v307 = vld [vmem:[%s3] sm:$0x1]
          %v309 = vlaneseq
          %v310 = vshrl.u32 %v309, 7
          %v311 = vsub.s32 0, %v310
          %v312 = vrot.slane %v307, %v311
          %v315 = vsel %vm221, %v296, 0
          %317 = vmatprep.subr.mxu0 0.0
          %318 = vmatpush1.msra.mxu0 0.0
          %319 = vmatprep.subr.mxu0 0.0
          %320 = vmatpush1.msra.mxu0 0.0
          %321 = vmatprep.subr.mxu0 0.0
          %322 = vmatpush1.msra.mxu0 0.0
          %323 = vmatprep.subr.mxu0 0.0
          %324 = vmatpush1.msra.mxu0 0.0
          %325 = vmatprep.subr.mxu0 0.0
          %326 = vmatpush1.msra.mxu0 0.0
          %327 = vmatprep.subr.mxu0 0.0
          %328 = vmatpush1.msra.mxu0 0.0
          %329 = vmatprep.subr.mxu0 0.0
          %330 = vmatpush1.msra.mxu0 0.0
          %331 = vmatprep.subr.mxu0 0.0
          %332 = vmatpush1.msra.mxu0 0.0
          %333 = vmatprep.subr.mxu0 0.0
          %334 = vmatpush1.msra.mxu0 0.0
          %335 = vmatprep.subr.mxu0 0.0
          %336 = vmatpush1.msra.mxu0 0.0
          %337 = vmatprep.subr.mxu0 0.0
          %338 = vmatpush1.msra.mxu0 0.0
          %339 = vmatprep.subr.mxu0 0.0
          %340 = vmatpush1.msra.mxu0 0.0
          %341 = vmatprep.subr.mxu0 0.0
          %342 = vmatpush1.msra.mxu0 %v306
          %343 = vmatprep.subr.mxu0 0.0
          %344 = vmatpush1.msra.mxu0 %v305
          %345 = vmatprep.subr.mxu0 0.0
          %346 = vmatpush1.msra.mxu0 %v304
          %347 = vmatprep.subr.mxu0 0.0
          %348 = vmatpush1.msra.mxu0 %v303
          %349 = vmatprep.subr.mxu0 0.0
          %350 = vmatpush2.msra.mxu0 0.0
          %351 = vmatprep.subr.mxu0 0.0
          %352 = vmatpush2.msra.mxu0 0.0
          %353 = vmatprep.subr.mxu0 0.0
          %354 = vmatpush2.msra.mxu0 0.0
          %355 = vmatprep.subr.mxu0 0.0
          %356 = vmatpush2.msra.mxu0 0.0
          %357 = vmatprep.subr.mxu0 0.0
          %358 = vmatpush2.msra.mxu0 0.0
          %359 = vmatprep.subr.mxu0 0.0
          %360 = vmatpush2.msra.mxu0 0.0
          %361 = vmatprep.subr.mxu0 0.0
          %362 = vmatpush2.msra.mxu0 0.0
          %363 = vmatprep.subr.mxu0 0.0
          %364 = vmatpush2.msra.mxu0 0.0
          %365 = vmatprep.subr.mxu0 0.0
          %366 = vmatpush2.msra.mxu0 0.0
          %367 = vmatprep.subr.mxu0 0.0
          %368 = vmatpush2.msra.mxu0 0.0
          %369 = vmatprep.subr.mxu0 0.0
          %370 = vmatpush2.msra.mxu0 0.0
          %371 = vmatprep.subr.mxu0 0.0
          %372 = vmatpush2.msra.mxu0 0.0
          %373 = vmatprep.subr.mxu0 0.0
          %374 = vmatpush2.msra.mxu0 0.0
          %375 = vmatprep.subr.mxu0 0.0
          %376 = vmatpush2.msra.mxu0 0.0
          %377 = vmatprep.subr.mxu0 0.0
          %378 = vmatpush2.msra.mxu0 0.0
          %379 = vmatprep.subr.mxu0 0.0
          %380 = vmatpush2.msra.mxu0 0.0
          %381 = vmatprep.mubr.f32.mxu0 0.0
          %382 = vmatmul.mubr.f32.gmra.mxu0 %v315
          %v383 = vpop.f32.mrf.mxu0
          %v384 = vadd.f32 %v312, %v383
          %v385 = vpop.f32.mrf.mxu0
          %386 = vdwg.mxu0
          %vm387 = vcmask 58368
          %v388 = vsel %vm387, %v384, -inf
          %389 = vmax.xlane.f32.xlu0 %v388
          %v390 = vpop.xlane.xlu0 %389
          %v391 = vsub.f32 %v384, %v390
          %v392 = vmul.f32 %v391, 1.442695
          %v393 = vpow.pop %v392
          %v394 = vsel %vm387, %v393, 0.0
          %395 = vadd.xlane.f32.xlu0 %v394
          %v396 = vpop.xlane.xlu0 %395
          %v397 = vrcp.pop %v396
          %v398 = vmul.f32 %v393, %v397
          %399 = vst.msk [vmem:[#allocation3] sm:$0x3] %vm387, %v398
        $region44: #{rnn_model_forward.3} parent=35 // pred_fallthru
          _
        // Predicated region
        $region45: #{rnn_model_forward.3} parent=35 // pred_check
          %p400 = pneg %p137
        $region46: #{rnn_model_forward.3} parent=35 // pred_check_branch
          %402 = sbr.rel (%p400) target = $region48
        $region47: #{rnn_model_forward.3} parent=35 // pred_region
          %s404 = ssub.s32 32, 32
          %405 = vsyncadd [#allocation4], %s404
          %s406 = smul.addr %s20, 32
          %s407 = scalar_lea.hbm %s4, %s406
          %s409 = sshll.u32 [#allocation3], 4
          %s410 = int_to_ptr.vmem [resolvable:$true] %s409
          %412 = dma.vmem_to_hbm [thread:$0]  %s410, 32, %s407, [#allocation4]
        $region48: #{rnn_model_forward.3} parent=35 // pred_fallthru
          _
        // Predicated region
        $region49: #{rnn_model_forward.3} parent=35 // pred_check
          %p413 = pneg %p137
        $region50: #{rnn_model_forward.3} parent=35 // pred_check_branch
          %415 = sbr.rel (%p413) target = $region52
        $region51: #{rnn_model_forward.3} parent=35 // pred_region
          %416 = dma.done [#allocation4], 32
        $region52: #{rnn_model_forward.3} parent=35 // pred_fallthru
          _
      $region36: #{rnn_model_forward.3} parent=5 // pred_fallthru
        _
      %p417 = scmp.le.s32.totalorder 2, %s11
      // Predicated region
      $region53: #{rnn_model_forward.3} parent=5 // pred_check
        %p418 = pneg %p417
      $region54: #{rnn_model_forward.3} parent=5 // pred_check_branch
        %420 = sbr.rel (%p418) target = $region56
      $region55: #{rnn_model_forward.3} parent=5 // pred_region
        %s421 = ssub.s32 %s11, 2
      $region56: #{rnn_model_forward.3} parent=5 // pred_fallthru
        _
    $region6: #{rnn_model_forward.3} parent=1 // loop_footer
      %s15 = sadd.s32 1, %s11
    $region7: #{rnn_model_forward.3} parent=1 // loop_footer_branch
      %10 = sbr.rel target = $region3
    $region8: #{rnn_model_forward.3} parent=1 // loop_exit
      _
    %422 = vsyncpa [#allocation4], 1
    %s423 = scalar_lea.sflag [#allocation4], 1
    %424 = vsyncpa %s423, 1

</llo_original>
